<compile_context>
chip_gen: v6e
topology: v6e:2x2x1
jax: 0.10.0
libtpu: 0.0.40
codegen_flags: <defaults>
</compile_context>

<pallas_src>
import functools

import jax
import jax.numpy as jnp
import numpy as np
from jax.experimental import pallas as pl
from jax.experimental.pallas import tpu as pltpu


def _round_up(n, m):
    return ((n + m - 1) // m) * m


def _slab_layout(x_size, y_size):
    """Row offsets of each sub-matrix inside the packed weight slab.

    Slab width = 2 * y_size lanes. Every sub-matrix starts on an 8-row
    (sublane-tile) boundary so static slices inside the kernel are aligned.
    """
    prj = y_size // 4
    width = 2 * y_size
    r_w1 = 0                                       # [w_mu1 | w_lv1]        (x_size, 2y)
    r_b1 = _round_up(r_w1 + x_size, 8)             # [b_mu1 | b_lv1]        (1, 2y)
    r_w2 = _round_up(r_b1 + 1, 8)                  # blockdiag(w_mu2,w_lv2) (2y, 2y)
    r_b2 = _round_up(r_w2 + 2 * y_size, 8)         # [b_mu2 | b_lv2]        (1, 2y)
    r_wp = _round_up(r_b2 + 1, 8)                  # w_prj (zero-padded)    (y, 2y)
    r_bp = _round_up(r_wp + y_size, 8)             # b_prj (zero-padded)    (1, 2y)
    rows = _round_up(r_bp + 1, 8)
    return dict(width=width, prj=prj, r_w1=r_w1, r_b1=r_b1, r_w2=r_w2,
                r_b2=r_b2, r_wp=r_wp, r_bp=r_bp, rows=rows)


def _mmilb_kernel(x_ref, y_ref, w_ref, out_ref, *, x_size, y_size, layout):
    L = layout
    prj = L["prj"]
    two_y = 2 * y_size

    x = x_ref[...]                                   # (bs, x_size)
    y = y_ref[...]                                   # (bs, y_size)
    bs = x.shape[0]

    # Static slices of the packed weight slab (all 8-row aligned).
    w1 = w_ref[L["r_w1"]:L["r_w1"] + x_size, :]      # (x_size, 2y)  [w_mu1 | w_lv1]
    b1 = w_ref[L["r_b1"]:L["r_b1"] + 1, :]           # (1, 2y)
    w2 = w_ref[L["r_w2"]:L["r_w2"] + two_y, :]       # (2y, 2y) block-diag
    b2 = w_ref[L["r_b2"]:L["r_b2"] + 1, :]           # (1, 2y)
    wp = w_ref[L["r_wp"]:L["r_wp"] + y_size, 0:prj]  # (y, prj)
    bp = w_ref[L["r_bp"]:L["r_bp"] + 1, 0:prj]       # (1, prj)

    # Fused first layer: [h_mu | h_lv] in a single MXU pass, then ReLU.
    h = jnp.maximum(jnp.dot(x, w1, preferred_element_type=jnp.float32) + b1, 0.0)

    # Fused block-diagonal second layer: [mu | logvar] in a single MXU pass.
    ml = jnp.dot(h, w2, preferred_element_type=jnp.float32) + b2
    mu = ml[:, :y_size]
    logvar = ml[:, y_size:]

    # Gaussian log-likelihood: mean_b sum_d -(mu - y)^2 / (2 * exp(logvar)).
    diff = mu - y
    positive = (diff * diff) * (-0.5) * jnp.exp(-logvar)
    lld = jnp.sum(positive) * (1.0 / bs)

    # entropy_prj: tanh(y @ W_prj + b_prj)
    yproj = jnp.tanh(jnp.dot(y, wp, preferred_element_type=jnp.float32) + bp)

    # Single lane-dense output slab: [ mu | logvar | yproj | lld (bcast) ].
    out_ref[:, 0:two_y] = ml
    out_ref[:, two_y:two_y + prj] = yproj
    out_ref[:, two_y + prj:] = jnp.broadcast_to(
        lld, (bs, out_ref.shape[1] - two_y - prj))


@jax.jit
def mmilb_forward(x, y, w_slab):
    """MMILB hot path in a single Pallas kernel.

    x: (bs, x_size) f32
    y: (bs, y_size) f32
    w_slab: packed weight slab from pack_params().
    Returns (lld scalar, y_proj (bs, y_size//4), mu, logvar).
    """
    bs, x_size = x.shape
    y_size = y.shape[1]
    L = _slab_layout(x_size, y_size)
    prj = L["prj"]
    two_y = 2 * y_size
    out_w = _round_up(two_y + prj + 1, 128)          # lane-dense output width

    kernel = functools.partial(_mmilb_kernel, x_size=x_size, y_size=y_size,
                               layout=L)

    out = pl.pallas_call(
        kernel,
        out_shape=jax.ShapeDtypeStruct((bs, out_w), jnp.float32),
        in_specs=[pl.BlockSpec(memory_space=pltpu.MemorySpace.VMEM)] * 3,
        out_specs=pl.BlockSpec(memory_space=pltpu.MemorySpace.VMEM),
        # TODO(synk): for production batch sizes add a batch grid axis
        # (dimension_semantics=("parallel",)) so v7x's two TensorCores split
        # the work, and cast matmul operands to bf16 on v6e/v7x.
    )(x, y, w_slab)

    mu = out[:, :y_size]
    logvar = out[:, y_size:two_y]
    y_proj = out[:, two_y:two_y + prj]
    lld = out[0, two_y + prj]
    return lld, y_proj, mu, logvar


def init_params(key, x_size, y_size):
    """Deterministic synthetic parameters. Weights stored as [in, out]."""
    ks = jax.random.split(key, 11)
    prj = y_size // 4

    def u(k, shape, fan_in):
        bound = 1.0 / np.sqrt(fan_in)
        return jax.random.uniform(k, shape, jnp.float32, -bound, bound)

    return {
        "w_mu1": u(ks[0], (x_size, y_size), x_size),
        "b_mu1": u(ks[1], (y_size,), x_size),
        "w_mu2": u(ks[2], (y_size, y_size), y_size),
        "b_mu2": u(ks[3], (y_size,), y_size),
        "w_lv1": u(ks[4], (x_size, y_size), x_size),
        "b_lv1": u(ks[5], (y_size,), x_size),
        "w_lv2": u(ks[6], (y_size, y_size), y_size),
        "b_lv2": u(ks[7], (y_size,), y_size),
        "w_prj": u(ks[8], (y_size, prj), y_size),
        "b_prj": u(ks[9], (prj,), y_size),
    }


def pack_params(params, x_size, y_size):
    """Pack all weights + biases into one contiguous f32 slab (done once at init)."""
    L = _slab_layout(x_size, y_size)
    prj, two_y = L["prj"], 2 * y_size
    slab = np.zeros((L["rows"], L["width"]), np.float32)

    slab[L["r_w1"]:L["r_w1"] + x_size, :y_size] = np.asarray(params["w_mu1"])
    slab[L["r_w1"]:L["r_w1"] + x_size, y_size:two_y] = np.asarray(params["w_lv1"])
    slab[L["r_b1"], :y_size] = np.asarray(params["b_mu1"])
    slab[L["r_b1"], y_size:two_y] = np.asarray(params["b_lv1"])

    # block-diagonal second layer
    slab[L["r_w2"]:L["r_w2"] + y_size, :y_size] = np.asarray(params["w_mu2"])
    slab[L["r_w2"] + y_size:L["r_w2"] + two_y, y_size:two_y] = np.asarray(params["w_lv2"])
    slab[L["r_b2"], :y_size] = np.asarray(params["b_mu2"])
    slab[L["r_b2"], y_size:two_y] = np.asarray(params["b_lv2"])

    slab[L["r_wp"]:L["r_wp"] + y_size, :prj] = np.asarray(params["w_prj"])
    slab[L["r_bp"], :prj] = np.asarray(params["b_prj"])
    return jnp.asarray(slab)


def mmilb_module(x, y, w_slab, labels=None, mem=None):
    """Full MMILB.forward semantics (history/slogdet entropy path not supported)."""
    lld, y_proj, mu, logvar = mmilb_forward(x, y, w_slab)
    sample_dict = {"pos": None, "neg": None}
    H = 0.0
    if labels is not None:
        lbl = jnp.squeeze(labels)
        pos_mask = lbl > 0
        neg_mask = lbl < 0
        # Keep everything on device: the original boolean gather has a
        # data-dependent output shape, so we return (values, mask) pairs
        # instead of forcing a device->host sync per step.
        sample_dict["pos"] = (y_proj, pos_mask)
        sample_dict["neg"] = (y_proj, neg_mask)
        # TODO(synk): mem-history covariance + slogdet entropy term
        # (dynamic-length concatenation of past batches) has no static-shape
        # Pallas equivalent here.
    return lld, sample_dict, H


def _reference(x, y, params):
    h_mu = jnp.maximum(x @ params["w_mu1"] + params["b_mu1"], 0.0)
    mu = h_mu @ params["w_mu2"] + params["b_mu2"]
    h_lv = jnp.maximum(x @ params["w_lv1"] + params["b_lv1"], 0.0)
    logvar = h_lv @ params["w_lv2"] + params["b_lv2"]
    positive = -(mu - y) ** 2 / 2.0 / jnp.exp(logvar)
    lld = jnp.mean(jnp.sum(positive, -1))
    yproj = jnp.tanh(y @ params["w_prj"] + params["b_prj"])
    return lld, yproj, mu, logvar


if __name__ == "__main__":
    bs, x_size, y_size = 8, 32, 32
    key = jax.random.PRNGKey(0)
    kx, ky, kl, kp = jax.random.split(key, 4)

    x = jax.random.normal(kx, (bs, x_size), jnp.float32)
    y = jax.random.normal(ky, (bs, y_size), jnp.float32)
    labels = jax.random.normal(kl, (bs, 1), jnp.float32)  # 1-D after squeeze
    params = init_params(kp, x_size, y_size)
    w_slab = pack_params(params, x_size, y_size)

    lld, sample_dict, H = mmilb_module(x, y, w_slab, labels=labels, mem=None)
    lld = jax.block_until_ready(lld)

    # sanity check against pure-JAX reference
    lld_k, yproj_k, mu_k, logvar_k = mmilb_forward(x, y, w_slab)
    jax.block_until_ready(yproj_k)
    lld_r, yproj_r, mu_r, logvar_r = _reference(x, y, params)
    np.testing.assert_allclose(np.asarray(lld_k), np.asarray(lld_r), rtol=1e-5, atol=1e-5)
    np.testing.assert_allclose(np.asarray(mu_k), np.asarray(mu_r), rtol=1e-5, atol=1e-5)
    np.testing.assert_allclose(np.asarray(logvar_k), np.asarray(logvar_r), rtol=1e-5, atol=1e-5)
    np.testing.assert_allclose(np.asarray(yproj_k), np.asarray(yproj_r), rtol=1e-5, atol=1e-5)
    np.testing.assert_allclose(np.asarray(lld), np.asarray(lld_r), rtol=1e-5, atol=1e-5)

    print("KERNEL_OK")
</pallas_src>

<mosaic_0001>
module attributes {stable_mosaic.version = 11 : i64} {
  func.func @_mmilb_kernel(%arg0: memref<8x32xf32, #tpu.memory_space<vmem>>, %arg1: memref<8x32xf32, #tpu.memory_space<vmem>>, %arg2: memref<152x64xf32, #tpu.memory_space<vmem>>, %arg3: memref<8x128xf32, #tpu.memory_space<vmem>>) attributes {dimension_semantics = [], scalar_prefetch = 0 : i64, scratch_operands = 0 : i64, tpu.core_type = #tpu.core_type<tc>} {
    %c0 = arith.constant 0 : index
    %c0_0 = arith.constant 0 : index
    %0 = vector.load %arg0[%c0, %c0_0] : memref<8x32xf32, #tpu.memory_space<vmem>>, vector<8x32xf32>
    %c0_1 = arith.constant 0 : index
    %c0_2 = arith.constant 0 : index
    %1 = vector.load %arg1[%c0_1, %c0_2] : memref<8x32xf32, #tpu.memory_space<vmem>>, vector<8x32xf32>
    %c0_3 = arith.constant 0 : index
    %c0_4 = arith.constant 0 : index
    %2 = vector.load %arg2[%c0_3, %c0_4] : memref<152x64xf32, #tpu.memory_space<vmem>>, vector<32x64xf32>
    %c32 = arith.constant 32 : index
    %c0_5 = arith.constant 0 : index
    %3 = vector.load %arg2[%c32, %c0_5] : memref<152x64xf32, #tpu.memory_space<vmem>>, vector<1x64xf32>
    %c40 = arith.constant 40 : index
    %c0_6 = arith.constant 0 : index
    %4 = vector.load %arg2[%c40, %c0_6] : memref<152x64xf32, #tpu.memory_space<vmem>>, vector<64x64xf32>
    %c104 = arith.constant 104 : index
    %c0_7 = arith.constant 0 : index
    %5 = vector.load %arg2[%c104, %c0_7] : memref<152x64xf32, #tpu.memory_space<vmem>>, vector<1x64xf32>
    %c112 = arith.constant 112 : index
    %c0_8 = arith.constant 0 : index
    %6 = vector.load %arg2[%c112, %c0_8] : memref<152x64xf32, #tpu.memory_space<vmem>>, vector<32x8xf32>
    %c144 = arith.constant 144 : index
    %c0_9 = arith.constant 0 : index
    %7 = vector.load %arg2[%c144, %c0_9] : memref<152x64xf32, #tpu.memory_space<vmem>>, vector<1x8xf32>
    %cst = arith.constant dense<0.000000e+00> : vector<8x64xf32>
    %8 = tpu.matmul %0, %2, %cst {dimension_numbers = #tpu.dot_dimension_numbers<[1], [0], [0], [1], [0, 0, 1, 1], [], []>} : vector<8x32xf32>, vector<32x64xf32>, vector<8x64xf32> -> vector<8x64xf32>
    %9 = vector.broadcast %3 : vector<1x64xf32> to vector<8x64xf32>
    %10 = arith.addf %8, %9 : vector<8x64xf32>
    %cst_10 = arith.constant 0.000000e+00 : f32
    %11 = vector.broadcast %cst_10 : f32 to vector<8x64xf32>
    %12 = arith.maximumf %10, %11 : vector<8x64xf32>
    %cst_11 = arith.constant dense<0.000000e+00> : vector<8x64xf32>
    %13 = tpu.matmul %12, %4, %cst_11 {dimension_numbers = #tpu.dot_dimension_numbers<[1], [0], [0], [1], [0, 0, 1, 1], [], []>} : vector<8x64xf32>, vector<64x64xf32>, vector<8x64xf32> -> vector<8x64xf32>
    %14 = vector.broadcast %5 : vector<1x64xf32> to vector<8x64xf32>
    %15 = arith.addf %13, %14 : vector<8x64xf32>
    %16 = vector.extract_strided_slice %15 {offsets = [0, 0], sizes = [8, 32], strides = [1, 1]} : vector<8x64xf32> to vector<8x32xf32>
    %17 = vector.extract_strided_slice %15 {offsets = [0, 32], sizes = [8, 32], strides = [1, 1]} : vector<8x64xf32> to vector<8x32xf32>
    %18 = arith.subf %16, %1 : vector<8x32xf32>
    %19 = arith.mulf %18, %18 : vector<8x32xf32>
    %cst_12 = arith.constant -5.000000e-01 : f32
    %20 = vector.broadcast %cst_12 : f32 to vector<8x32xf32>
    %21 = arith.mulf %19, %20 : vector<8x32xf32>
    %cst_13 = arith.constant 0.000000e+00 : f32
    %22 = vector.broadcast %cst_13 : f32 to vector<8x32xf32>
    %23 = arith.subf %22, %17 : vector<8x32xf32>
    %24 = math.exp %23 : vector<8x32xf32>
    %25 = arith.mulf %21, %24 : vector<8x32xf32>
    %26 = vector.shape_cast %25 : vector<8x32xf32> to vector<1x8x32xf32>
    %cst_14 = arith.constant dense<0.000000e+00> : vector<1xf32>
    %27 = vector.multi_reduction <add>, %26, %cst_14 [1, 2] : vector<1x8x32xf32> to vector<1xf32>
    %28 = vector.shape_cast %27 : vector<1xf32> to vector<1x1x1xf32>
    %29 = vector.extract %28[0, 0, 0] : f32 from vector<1x1x1xf32>
    %cst_15 = arith.constant 1.250000e-01 : f32
    %30 = arith.mulf %29, %cst_15 : f32
    %cst_16 = arith.constant dense<0.000000e+00> : vector<8x8xf32>
    %31 = tpu.matmul %1, %6, %cst_16 {dimension_numbers = #tpu.dot_dimension_numbers<[1], [0], [0], [1], [0, 0, 1, 1], [], []>} : vector<8x32xf32>, vector<32x8xf32>, vector<8x8xf32> -> vector<8x8xf32>
    %32 = vector.broadcast %7 : vector<1x8xf32> to vector<8x8xf32>
    %33 = arith.addf %31, %32 : vector<8x8xf32>
    %34 = math.tanh %33 : vector<8x8xf32>
    %c0_17 = arith.constant 0 : index
    %c0_18 = arith.constant 0 : index
    %35 = vector.load %arg3[%c0_17, %c0_18] : memref<8x128xf32, #tpu.memory_space<vmem>>, vector<8x64xf32>
    tpu.vector_store %arg3[%c0_17, %c0_18], %15 {strides = array<i32>} : memref<8x128xf32, #tpu.memory_space<vmem>>, vector<8x64xf32>,
    %c0_19 = arith.constant 0 : index
    %c64 = arith.constant 64 : index
    %36 = vector.load %arg3[%c0_19, %c64] : memref<8x128xf32, #tpu.memory_space<vmem>>, vector<8x8xf32>
    tpu.vector_store %arg3[%c0_19, %c64], %34 {strides = array<i32>} : memref<8x128xf32, #tpu.memory_space<vmem>>, vector<8x8xf32>,
    %37 = vector.broadcast %30 : f32 to vector<8x56xf32>
    %c0_20 = arith.constant 0 : index
    %c72 = arith.constant 72 : index
    %38 = vector.load %arg3[%c0_20, %c72] : memref<8x128xf32, #tpu.memory_space<vmem>>, vector<8x56xf32>
    tpu.vector_store %arg3[%c0_20, %c72], %37 {strides = array<i32>} : memref<8x128xf32, #tpu.memory_space<vmem>>, vector<8x56xf32>,
    return
  }
}

</mosaic_0001>

<llo_original>
// kernel: mmilb_forward.1
$region0: #{mmilb_forward.1}
  #allocation0 [shape = 'u32[]', space=smem, size = 0x4, offset = 0x4, fixed_abs, tag = 'smem constant byte address 0x4 - core index']
  #allocation1 [shape = 'u32[144,128]{1,0:T(1,128)}', space=vmem, size = 0x12000, scoped, tag = 'internal scratch']
  %s0 = inlined_call_operand.vmem [shape: f32[8,32], index: 0, kind: input, shape index: {}]
  %s1 = inlined_call_operand.vmem [shape: f32[8,32], index: 1, kind: input, shape index: {}]
  %s2 = inlined_call_operand.vmem [shape: f32[152,64], index: 2, kind: input, shape index: {}]
  %s3 = inlined_call_operand.vmem [shape: f32[8,128], index: 3, kind: output, shape index: {}]
  %s4 = sld [smem:[#allocation0]]
  $region22: #{mmilb_forward.1} parent=0
    _
  %s6 = ssub.s32 1, %s4
  %s7 = scalar_select 0, %s6, %s4
  // Predicated region
  $region2: #{mmilb_forward.1} parent=0 // pred_check
    _
  $region3: #{mmilb_forward.1} parent=0 // pred_check_branch
    %9 = sbr.rel (0) target = $region5
  $region4: #{mmilb_forward.1} parent=0 // pred_region
    _
  $region5: #{mmilb_forward.1} parent=0 // pred_fallthru
    _
  // Predicated region
  $region6: #{mmilb_forward.1} parent=0 // pred_check
    _
  $region7: #{mmilb_forward.1} parent=0 // pred_check_branch
    %11 = sbr.rel (0) target = $region9
  $region8: #{mmilb_forward.1} parent=0 // pred_region
    _
  $region9: #{mmilb_forward.1} parent=0 // pred_fallthru
    _
  // Predicated region
  $region10: #{mmilb_forward.1} parent=0 // pred_check
    _
  $region11: #{mmilb_forward.1} parent=0 // pred_check_branch
    %13 = sbr.rel (0) target = $region13
  $region12: #{mmilb_forward.1} parent=0 // pred_region
    _
  $region13: #{mmilb_forward.1} parent=0 // pred_fallthru
    _
  %v14 = vld [vmem:[%s0] sm:$0xff]
  %v15 = vld [vmem:[%s1] sm:$0xff]
  %v16 = vld [vmem:[%s2] sm:$0xff]
  %v17 = vld [vmem:[%s2 + $0x8] sm:$0xff]
  %v18 = vld [vmem:[%s2 + $0x10] sm:$0xff]
  %v19 = vld [vmem:[%s2 + $0x18] sm:$0xff]
  %v20 = vld [vmem:[%s2 + $0x20] sm:$0x1]
  %v21 = vld [vmem:[%s2 + $0x28] sm:$0xff]
  %v22 = vld [vmem:[%s2 + $0x30] sm:$0xff]
  %v23 = vld [vmem:[%s2 + $0x38] sm:$0xff]
  %v24 = vld [vmem:[%s2 + $0x40] sm:$0xff]
  %v25 = vld [vmem:[%s2 + $0x48] sm:$0xff]
  %v26 = vld [vmem:[%s2 + $0x50] sm:$0xff]
  %v27 = vld [vmem:[%s2 + $0x58] sm:$0xff]
  %v28 = vld [vmem:[%s2 + $0x60] sm:$0xff]
  %v29 = vld [vmem:[%s2 + $0x68] sm:$0x1]
  %v30 = vld [vmem:[%s2 + $0x70] sm:$0xff]
  %v31 = vld [vmem:[%s2 + $0x78] sm:$0xff]
  %v32 = vld [vmem:[%s2 + $0x80] sm:$0xff]
  %v33 = vld [vmem:[%s2 + $0x88] sm:$0xff]
  %v34 = vld [vmem:[%s2 + $0x90] sm:$0x1]
  %v35 = vlaneseq
  %v36 = vshrl.u32 %v35, 7
  %v37 = vsub.s32 0, %v36
  %v38 = vrot.slane %v20, %v37
  %vm39 = vcmask 261120
  %v41 = vsel %vm39, %v14, 0
  %43 = vmatprep.subr.mxu0 0.0
  %44 = vmatpush1.msra.mxu0 0.0
  %45 = vmatprep.subr.mxu0 0.0
  %46 = vmatpush1.msra.mxu0 0.0
  %47 = vmatprep.subr.mxu0 0.0
  %48 = vmatpush1.msra.mxu0 0.0
  %49 = vmatprep.subr.mxu0 0.0
  %50 = vmatpush1.msra.mxu0 0.0
  %51 = vmatprep.subr.mxu0 0.0
  %52 = vmatpush1.msra.mxu0 0.0
  %53 = vmatprep.subr.mxu0 0.0
  %54 = vmatpush1.msra.mxu0 0.0
  %55 = vmatprep.subr.mxu0 0.0
  %56 = vmatpush1.msra.mxu0 0.0
  %57 = vmatprep.subr.mxu0 0.0
  %58 = vmatpush1.msra.mxu0 0.0
  %59 = vmatprep.subr.mxu0 0.0
  %60 = vmatpush1.msra.mxu0 0.0
  %61 = vmatprep.subr.mxu0 0.0
  %62 = vmatpush1.msra.mxu0 0.0
  %63 = vmatprep.subr.mxu0 0.0
  %64 = vmatpush1.msra.mxu0 0.0
  %65 = vmatprep.subr.mxu0 0.0
  %66 = vmatpush1.msra.mxu0 0.0
  %67 = vmatprep.subr.mxu0 0.0
  %68 = vmatpush1.msra.mxu0 %v19
  %69 = vmatprep.subr.mxu0 0.0
  %70 = vmatpush1.msra.mxu0 %v18
  %71 = vmatprep.subr.mxu0 0.0
  %72 = vmatpush1.msra.mxu0 %v17
  %73 = vmatprep.subr.mxu0 0.0
  %74 = vmatpush1.msra.mxu0 %v16
  %75 = vmatprep.subr.mxu0 0.0
  %76 = vmatpush2.msra.mxu0 0.0
  %77 = vmatprep.subr.mxu0 0.0
  %78 = vmatpush2.msra.mxu0 0.0
  %79 = vmatprep.subr.mxu0 0.0
  %80 = vmatpush2.msra.mxu0 0.0
  %81 = vmatprep.subr.mxu0 0.0
  %82 = vmatpush2.msra.mxu0 0.0
  %83 = vmatprep.subr.mxu0 0.0
  %84 = vmatpush2.msra.mxu0 0.0
  %85 = vmatprep.subr.mxu0 0.0
  %86 = vmatpush2.msra.mxu0 0.0
  %87 = vmatprep.subr.mxu0 0.0
  %88 = vmatpush2.msra.mxu0 0.0
  %89 = vmatprep.subr.mxu0 0.0
  %90 = vmatpush2.msra.mxu0 0.0
  %91 = vmatprep.subr.mxu0 0.0
  %92 = vmatpush2.msra.mxu0 0.0
  %93 = vmatprep.subr.mxu0 0.0
  %94 = vmatpush2.msra.mxu0 0.0
  %95 = vmatprep.subr.mxu0 0.0
  %96 = vmatpush2.msra.mxu0 0.0
  %97 = vmatprep.subr.mxu0 0.0
  %98 = vmatpush2.msra.mxu0 0.0
  %99 = vmatprep.subr.mxu0 0.0
  %100 = vmatpush2.msra.mxu0 0.0
  %101 = vmatprep.subr.mxu0 0.0
  %102 = vmatpush2.msra.mxu0 0.0
  %103 = vmatprep.subr.mxu0 0.0
  %104 = vmatpush2.msra.mxu0 0.0
  %105 = vmatprep.subr.mxu0 0.0
  %106 = vmatpush2.msra.mxu0 0.0
  %107 = vmatprep.mubr.f32.mxu0 0.0
  %108 = vmatmul.mubr.f32.gmra.mxu0 %v41
  %v109 = vpop.f32.mrf.mxu0
  %v110 = vadd.f32 %v38, %v109
  %v111 = vpop.f32.mrf.mxu0
  %112 = vdwg.mxu0
  %v113 = vmax.f32 %v110, 0.0
  %v114 = vlaneseq
  %v115 = vshrl.u32 %v114, 7
  %v116 = vsub.s32 0, %v115
  %v117 = vrot.slane %v29, %v116
  %vm118 = vcmask 523264
  %v120 = vsel %vm118, %v113, 0
  %122 = vmatprep.subr.mxu0 0.0
  %123 = vmatpush1.msra.mxu0 0.0
  %124 = vmatprep.subr.mxu0 0.0
  %125 = vmatpush1.msra.mxu0 0.0
  %126 = vmatprep.subr.mxu0 0.0
  %127 = vmatpush1.msra.mxu0 0.0
  %128 = vmatprep.subr.mxu0 0.0
  %129 = vmatpush1.msra.mxu0 0.0
  %130 = vmatprep.subr.mxu0 0.0
  %131 = vmatpush1.msra.mxu0 0.0
  %132 = vmatprep.subr.mxu0 0.0
  %133 = vmatpush1.msra.mxu0 0.0
  %134 = vmatprep.subr.mxu0 0.0
  %135 = vmatpush1.msra.mxu0 0.0
  %136 = vmatprep.subr.mxu0 0.0
  %137 = vmatpush1.msra.mxu0 0.0
  %138 = vmatprep.subr.mxu0 0.0
  %139 = vmatpush1.msra.mxu0 %v28
  %140 = vmatprep.subr.mxu0 0.0
  %141 = vmatpush1.msra.mxu0 %v27
  %142 = vmatprep.subr.mxu0 0.0
  %143 = vmatpush1.msra.mxu0 %v26
  %144 = vmatprep.subr.mxu0 0.0
  %145 = vmatpush1.msra.mxu0 %v25
  %146 = vmatprep.subr.mxu0 0.0
  %147 = vmatpush1.msra.mxu0 %v24
  %148 = vmatprep.subr.mxu0 0.0
  %149 = vmatpush1.msra.mxu0 %v23
  %150 = vmatprep.subr.mxu0 0.0
  %151 = vmatpush1.msra.mxu0 %v22
  %152 = vmatprep.subr.mxu0 0.0
  %153 = vmatpush1.msra.mxu0 %v21
  %154 = vmatprep.subr.mxu0 0.0
  %155 = vmatpush2.msra.mxu0 0.0
  %156 = vmatprep.subr.mxu0 0.0
  %157 = vmatpush2.msra.mxu0 0.0
  %158 = vmatprep.subr.mxu0 0.0
  %159 = vmatpush2.msra.mxu0 0.0
  %160 = vmatprep.subr.mxu0 0.0
  %161 = vmatpush2.msra.mxu0 0.0
  %162 = vmatprep.subr.mxu0 0.0
  %163 = vmatpush2.msra.mxu0 0.0
  %164 = vmatprep.subr.mxu0 0.0
  %165 = vmatpush2.msra.mxu0 0.0
  %166 = vmatprep.subr.mxu0 0.0
  %167 = vmatpush2.msra.mxu0 0.0
  %168 = vmatprep.subr.mxu0 0.0
  %169 = vmatpush2.msra.mxu0 0.0
  %170 = vmatprep.subr.mxu0 0.0
  %171 = vmatpush2.msra.mxu0 0.0
  %172 = vmatprep.subr.mxu0 0.0
  %173 = vmatpush2.msra.mxu0 0.0
  %174 = vmatprep.subr.mxu0 0.0
  %175 = vmatpush2.msra.mxu0 0.0
  %176 = vmatprep.subr.mxu0 0.0
  %177 = vmatpush2.msra.mxu0 0.0
  %178 = vmatprep.subr.mxu0 0.0
  %179 = vmatpush2.msra.mxu0 0.0
  %180 = vmatprep.subr.mxu0 0.0
  %181 = vmatpush2.msra.mxu0 0.0
  %182 = vmatprep.subr.mxu0 0.0
  %183 = vmatpush2.msra.mxu0 0.0
  %184 = vmatprep.subr.mxu0 0.0
  %185 = vmatpush2.msra.mxu0 0.0
  %186 = vmatprep.mubr.f32.mxu0 0.0
  %187 = vmatmul.mubr.f32.gmra.mxu0 %v120
  %v188 = vpop.f32.mrf.mxu0
  %v189 = vadd.f32 %v117, %v188
  %v190 = vpop.f32.mrf.mxu0
  %191 = vdwg.mxu0
  %v192 = vsub.f32 %v189, %v15
  %v193 = vmul.f32 %v192, %v192
  %v194 = vmul.f32 %v193, -0.5
  %v195 = vsub.f32 0.0, %v189
  %v196 = vmul.f32 %v195, 1.442695
  %v197 = vpow.pop %v196
  %199 = vrot.lane.b32.xlu0 %v197, 96
  %v200 = vpop.permute.xlu0 %199
  %v202 = vmul.f32 %v194, %v200
  %v203 = vsel %vm39, %v202, 0.0
  %204 = vadd.xlane.f32.xlu0 %v203
  %v205 = vpop.xlane.xlu0 %204
  %v206 = vrot.slane %v205, 4
  %v207 = vadd.f32 %v205, %v206
  %v208 = vrot.slane %v207, 2
  %v209 = vadd.f32 %v207, %v208
  %v210 = vrot.slane %v209, 1
  %v211 = vadd.f32 %v209, %v210
  %s212 = vtos %v211
  %s213 = smul.f32 %s212, 0.125
  %v214 = vlaneseq
  %v215 = vshrl.u32 %v214, 7
  %v216 = vsub.s32 0, %v215
  %v217 = vrot.slane %v34, %v216
  %v219 = vsel %vm39, %v15, 0
  %221 = vmatprep.subr.mxu0 0.0
  %222 = vmatpush1.msra.mxu0 0.0
  %223 = vmatprep.subr.mxu0 0.0
  %224 = vmatpush1.msra.mxu0 0.0
  %225 = vmatprep.subr.mxu0 0.0
  %226 = vmatpush1.msra.mxu0 0.0
  %227 = vmatprep.subr.mxu0 0.0
  %228 = vmatpush1.msra.mxu0 0.0
  %229 = vmatprep.subr.mxu0 0.0
  %230 = vmatpush1.msra.mxu0 0.0
  %231 = vmatprep.subr.mxu0 0.0
  %232 = vmatpush1.msra.mxu0 0.0
  %233 = vmatprep.subr.mxu0 0.0
  %234 = vmatpush1.msra.mxu0 0.0
  %235 = vmatprep.subr.mxu0 0.0
  %236 = vmatpush1.msra.mxu0 0.0
  %237 = vmatprep.subr.mxu0 0.0
  %238 = vmatpush1.msra.mxu0 0.0
  %239 = vmatprep.subr.mxu0 0.0
  %240 = vmatpush1.msra.mxu0 0.0
  %241 = vmatprep.subr.mxu0 0.0
  %242 = vmatpush1.msra.mxu0 0.0
  %243 = vmatprep.subr.mxu0 0.0
  %244 = vmatpush1.msra.mxu0 0.0
  %245 = vmatprep.subr.mxu0 0.0
  %246 = vmatpush1.msra.mxu0 %v33
  %247 = vmatprep.subr.mxu0 0.0
  %248 = vmatpush1.msra.mxu0 %v32
  %249 = vmatprep.subr.mxu0 0.0
  %250 = vmatpush1.msra.mxu0 %v31
  %251 = vmatprep.subr.mxu0 0.0
  %252 = vmatpush1.msra.mxu0 %v30
  %253 = vmatprep.subr.mxu0 0.0
  %254 = vmatpush2.msra.mxu0 0.0
  %255 = vmatprep.subr.mxu0 0.0
  %256 = vmatpush2.msra.mxu0 0.0
  %257 = vmatprep.subr.mxu0 0.0
  %258 = vmatpush2.msra.mxu0 0.0
  %259 = vmatprep.subr.mxu0 0.0
  %260 = vmatpush2.msra.mxu0 0.0
  %261 = vmatprep.subr.mxu0 0.0
  %262 = vmatpush2.msra.mxu0 0.0
  %263 = vmatprep.subr.mxu0 0.0
  %264 = vmatpush2.msra.mxu0 0.0
  %265 = vmatprep.subr.mxu0 0.0
  %266 = vmatpush2.msra.mxu0 0.0
  %267 = vmatprep.subr.mxu0 0.0
  %268 = vmatpush2.msra.mxu0 0.0
  %269 = vmatprep.subr.mxu0 0.0
  %270 = vmatpush2.msra.mxu0 0.0
  %271 = vmatprep.subr.mxu0 0.0
  %272 = vmatpush2.msra.mxu0 0.0
  %273 = vmatprep.subr.mxu0 0.0
  %274 = vmatpush2.msra.mxu0 0.0
  %275 = vmatprep.subr.mxu0 0.0
  %276 = vmatpush2.msra.mxu0 0.0
  %277 = vmatprep.subr.mxu0 0.0
  %278 = vmatpush2.msra.mxu0 0.0
  %279 = vmatprep.subr.mxu0 0.0
  %280 = vmatpush2.msra.mxu0 0.0
  %281 = vmatprep.subr.mxu0 0.0
  %282 = vmatpush2.msra.mxu0 0.0
  %283 = vmatprep.subr.mxu0 0.0
  %284 = vmatpush2.msra.mxu0 0.0
  %285 = vmatprep.mubr.f32.mxu0 0.0
  %286 = vmatmul.mubr.f32.gmra.mxu0 %v219
  %v287 = vpop.f32.mrf.mxu0
  %v288 = vadd.f32 %v217, %v287
  %v289 = vpop.f32.mrf.mxu0
  %290 = vdwg.mxu0
  %v291 = vtanh.pop %v288
  %292 = vst.msk [vmem:[%s3] sm:$0xff] %vm118, %v189
  %294 = vrot.lane.b32.xlu0 %v291, 64
  %v295 = vpop.permute.xlu0 %294
  %vm297 = vcmask 589312
  %298 = vst.msk [vmem:[%s3] sm:$0xff] %vm297, %v295
  %v299 = vstv %s213
  %vm300 = vcmask 1048128
  %301 = vst.msk [vmem:[%s3] sm:$0xff] %vm300, %v299
  // Predicated region
  $region14: #{mmilb_forward.1} parent=0 // pred_check
    _
  $region15: #{mmilb_forward.1} parent=0 // pred_check_branch
    %303 = sbr.rel (0) target = $region17
  $region16: #{mmilb_forward.1} parent=0 // pred_region
    _
  $region17: #{mmilb_forward.1} parent=0 // pred_fallthru
    _
  // Predicated region
  $region18: #{mmilb_forward.1} parent=0 // pred_check
    _
  $region19: #{mmilb_forward.1} parent=0 // pred_check_branch
    %305 = sbr.rel (0) target = $region21
  $region20: #{mmilb_forward.1} parent=0 // pred_region
    _
  $region21: #{mmilb_forward.1} parent=0 // pred_fallthru
    _

</llo_original>
